<compile_context>
chip_gen: v5e
topology: v5e:2x2
jax: 0.10.0
libtpu: 0.0.40
codegen_flags: <defaults>
</compile_context>

<pallas_src>
import functools
import math

import jax
import jax.numpy as jnp
from jax.experimental import pallas as pl
from jax.experimental.pallas import tpu as pltpu


def dgd_kernel(z_ref, w1_ref, b1_ref, w2_ref, b2_ref, out_ref, *, activation):
    """recon = act(relu(z @ W1 + b1) @ W2 + b2) for one batch tile."""
    # Hidden layer: MXU matmul with f32 accumulation, bias + ReLU on the VPU.
    h = jnp.dot(z_ref[...], w1_ref[...], preferred_element_type=jnp.float32)
    h = jnp.maximum(h + b1_ref[...], 0.0)
    # Output layer: cast back to the weight dtype (bf16 feeds the MXU natively),
    # accumulate in f32, add bias, activation in f32 (EUP), cast on the store.
    y = jnp.dot(h.astype(w2_ref.dtype), w2_ref[...],
                preferred_element_type=jnp.float32)
    y = y + b2_ref[...]
    if activation == "sigmoid":        # scaling_type in ('library','total_count')
        act = jax.nn.sigmoid(y)
    else:                              # scaling_type in ('mean','median')
        act = jax.nn.softplus(y)
    out_ref[...] = act.astype(out_ref.dtype)


def _round_up(x, m):
    return ((x + m - 1) // m) * m


def dgd_forward(z, w1, b1, w2, b2, *, conditional_vars=None, tile_m=8192,
                compute_dtype=jnp.bfloat16, out_dtype=jnp.bfloat16,
                activation="sigmoid"):
    """Fused DGD forward: act(relu(z @ W1 + b1) @ W2 + b2)."""
    if conditional_vars is not None:
        z = jnp.concatenate([z, conditional_vars], axis=-1)
    batch, d0 = z.shape
    d1 = w1.shape[1]
    d2 = w2.shape[1]

    # bf16 halves the HBM traffic of z (the only batch-scaled input) and of
    # the dominant output stream on all generations.  Biases stay f32 so the
    # bias-add / ReLU / sigmoid run in f32 everywhere (incl. v5e).
    z = z.astype(compute_dtype)
    w1 = w1.astype(compute_dtype)
    w2 = w2.astype(compute_dtype)
    b1 = b1.astype(jnp.float32).reshape(1, d1)
    b2 = b2.astype(jnp.float32).reshape(1, d2)

    # Batch tiling.  No explicit padding: the partial boundary block is
    # handled by Pallas (out-of-bounds output rows are masked on the store).
    # Ensure >=2 grid steps for larger batches so v7x's second TC gets work,
    # and balance tile sizes so padding waste is < 1 tile.
    min_steps = 2 if batch > 1024 else 1
    n_steps = max(pl.cdiv(batch, tile_m), min_steps)
    tm = max(8, _round_up(pl.cdiv(batch, n_steps), 8))
    grid = (pl.cdiv(batch, tm),)

    cdt_size = jnp.dtype(compute_dtype).itemsize
    out_size = jnp.dtype(out_dtype).itemsize

    # VMEM budget; last dims are counted at their 128-lane-padded footprint
    # (a (tm, 32) block occupies ~4x its nominal bytes in native (8,128) tiles).
    def lane_pad(d):
        return _round_up(d, 128)

    vmem_bytes = (
        2 * tm * lane_pad(d0) * cdt_size       # z tile, double-buffered
        + 2 * tm * lane_pad(d2) * out_size     # out tile, double-buffered
        + tm * lane_pad(d1) * 4                # hidden f32 temp
        + tm * lane_pad(d2) * 4                # pre-activation f32 temp
        + (lane_pad(d0) * d1 + lane_pad(d1) * d2 + d1 + d2) * 4 * 2  # weights
        + (2 << 20))                           # headroom
    vmem_limit = int(min(max(vmem_bytes, 32 << 20), 100 << 20))

    cost = pl.CostEstimate(
        flops=2 * grid[0] * tm * (d0 * d1 + d1 * d2),
        transcendentals=batch * d2,            # sigmoid -> exp per output elem
        bytes_accessed=(batch * d0 * cdt_size             # read z
                        + batch * d2 * out_size           # write recon
                        + (d0 * d1 + d1 * d2) * cdt_size  # weights
                        + (d1 + d2) * 4),                 # biases
    )

    return pl.pallas_call(
        functools.partial(dgd_kernel, activation=activation),
        out_shape=jax.ShapeDtypeStruct((batch, d2), out_dtype),
        grid=grid,
        in_specs=[
            pl.BlockSpec((tm, d0), lambda i: (i, 0)),    # z: tiled over batch
            pl.BlockSpec((d0, d1), lambda i: (0, 0)),    # W1: resident
            pl.BlockSpec((1, d1), lambda i: (0, 0)),     # b1: resident
            pl.BlockSpec((d1, d2), lambda i: (0, 0)),    # W2: resident
            pl.BlockSpec((1, d2), lambda i: (0, 0)),     # b2: resident
        ],
        out_specs=pl.BlockSpec((tm, d2), lambda i: (i, 0)),
        compiler_params=pltpu.CompilerParams(
            dimension_semantics=("parallel",),           # shard across v7x TCs
            vmem_limit_bytes=vmem_limit,
        ),
        cost_estimate=cost,
    )(z, w1, b1, w2, b2)


def init_linear_params(key, in_dim, out_dim):
    """Deterministic PyTorch-style uniform(-1/sqrt(in), 1/sqrt(in)) init."""
    kw, kb = jax.random.split(key)
    bound = 1.0 / math.sqrt(in_dim)
    # stored as (in, out) so the kernel does x @ W
    w = jax.random.uniform(kw, (in_dim, out_dim), jnp.float32, -bound, bound)
    b = jax.random.uniform(kb, (1, out_dim), jnp.float32, -bound, bound)
    return w, b


def reference_forward(z, w1, b1, w2, b2):
    h = jnp.maximum(z @ w1 + b1, 0.0)
    return jax.nn.sigmoid(h @ w2 + b2)


if __name__ == "__main__":
    # DGD(dim_list=[32, 64, 128], r_init=2, scaling_type='library')
    dim_list = [32, 64, 128]
    batch = 8

    key = jax.random.PRNGKey(0)
    kz, k1, k2 = jax.random.split(key, 3)

    z = jax.random.normal(kz, (batch, dim_list[0]), jnp.float32)
    w1, b1 = init_linear_params(k1, dim_list[0], dim_list[1])
    w2, b2 = init_linear_params(k2, dim_list[1], dim_list[2])

    # NBLayer's log_r parameter exists in the module but is unused in forward().
    # TODO(synk): NBLayer.loss/logprob/sample (NB density + sampling) are not
    # part of forward() and are not implemented here.
    log_r = jnp.full((1, dim_list[2]), math.log(2.0), jnp.float32)

    ref = reference_forward(z, w1, b1, w2, b2)

    # Exact-parity path (f32 compute, f32 output) vs the PyTorch semantics.
    out_f32 = dgd_forward(z, w1, b1, w2, b2,
                          compute_dtype=jnp.float32, out_dtype=jnp.float32)
    jax.block_until_ready(out_f32)
    assert out_f32.shape == (batch, dim_list[2])
    assert jnp.allclose(out_f32, ref, atol=1e-5, rtol=1e-5)

    # Default fast path: bf16 compute + bf16 output (looser tolerance).
    out_bf16 = dgd_forward(z, w1, b1, w2, b2)
    jax.block_until_ready(out_bf16)
    assert out_bf16.shape == (batch, dim_list[2])
    assert out_bf16.dtype == jnp.bfloat16
    assert jnp.allclose(out_bf16.astype(jnp.float32), ref, atol=5e-2)

    # Non-multiple-of-tile batch: partial boundary block, no padding/slicing.
    out5 = dgd_forward(z[:5], w1, b1, w2, b2,
                       compute_dtype=jnp.float32, out_dtype=jnp.float32)
    jax.block_until_ready(out5)
    assert out5.shape == (5, dim_list[2])
    assert jnp.allclose(out5, ref[:5], atol=1e-5, rtol=1e-5)

    # Multi-step grid with a balanced, non-divisible tile (exercises the
    # boundary-block masking on both input read and output write).
    z300 = jax.random.normal(jax.random.PRNGKey(1), (300, dim_list[0]),
                             jnp.float32)
    ref300 = reference_forward(z300, w1, b1, w2, b2)
    out300 = dgd_forward(z300, w1, b1, w2, b2, tile_m=128,
                         compute_dtype=jnp.float32, out_dtype=jnp.float32)
    jax.block_until_ready(out300)
    assert out300.shape == (300, dim_list[2])
    assert jnp.allclose(out300, ref300, atol=1e-5, rtol=1e-5)

    print("KERNEL_OK")
</pallas_src>

<mosaic_0001>
module attributes {stable_mosaic.version = 11 : i64} {
  func.func @dgd_kernel(%arg0: i32, %arg1: memref<8x32xf32, #tpu.memory_space<vmem>>, %arg2: memref<32x64xf32, #tpu.memory_space<vmem>>, %arg3: memref<1x64xf32, #tpu.memory_space<vmem>>, %arg4: memref<64x128xf32, #tpu.memory_space<vmem>>, %arg5: memref<1x128xf32, #tpu.memory_space<vmem>>, %arg6: memref<8x128xf32, #tpu.memory_space<vmem>>) attributes {dimension_semantics = [#tpu.dimension_semantics<parallel>], iteration_bounds = array<i64: 1>, scalar_prefetch = 0 : i64, scratch_operands = 0 : i64, tpu.core_type = #tpu.core_type<tc>, window_params = [{transform_indices = @transform_0, window_bounds = array<i64: 8, 32>}, {pipeline_mode = #tpu.pipeline_mode<synchronous>, transform_indices = @transform_1, window_bounds = array<i64: 32, 64>}, {pipeline_mode = #tpu.pipeline_mode<synchronous>, transform_indices = @transform_2, window_bounds = array<i64: 1, 64>}, {pipeline_mode = #tpu.pipeline_mode<synchronous>, transform_indices = @transform_3, window_bounds = array<i64: 64, 128>}, {pipeline_mode = #tpu.pipeline_mode<synchronous>, transform_indices = @transform_4, window_bounds = array<i64: 1, 128>}, {transform_indices = @transform_5, window_bounds = array<i64: 8, 128>}]} {
    %c0 = arith.constant 0 : index
    %c0_0 = arith.constant 0 : index
    %0 = vector.load %arg1[%c0, %c0_0] : memref<8x32xf32, #tpu.memory_space<vmem>>, vector<8x32xf32>
    %c0_1 = arith.constant 0 : index
    %c0_2 = arith.constant 0 : index
    %1 = vector.load %arg2[%c0_1, %c0_2] : memref<32x64xf32, #tpu.memory_space<vmem>>, vector<32x64xf32>
    %cst = arith.constant dense<0.000000e+00> : vector<8x64xf32>
    %2 = tpu.matmul %0, %1, %cst {dimension_numbers = #tpu.dot_dimension_numbers<[1], [0], [0], [1], [0, 0, 1, 1], [], []>} : vector<8x32xf32>, vector<32x64xf32>, vector<8x64xf32> -> vector<8x64xf32>
    %c0_3 = arith.constant 0 : index
    %c0_4 = arith.constant 0 : index
    %3 = vector.load %arg3[%c0_3, %c0_4] : memref<1x64xf32, #tpu.memory_space<vmem>>, vector<1x64xf32>
    %4 = vector.broadcast %3 : vector<1x64xf32> to vector<8x64xf32>
    %5 = arith.addf %2, %4 : vector<8x64xf32>
    %cst_5 = arith.constant 0.000000e+00 : f32
    %6 = vector.broadcast %cst_5 : f32 to vector<8x64xf32>
    %7 = arith.maximumf %5, %6 : vector<8x64xf32>
    %c0_6 = arith.constant 0 : index
    %c0_7 = arith.constant 0 : index
    %8 = vector.load %arg4[%c0_6, %c0_7] : memref<64x128xf32, #tpu.memory_space<vmem>>, vector<64x128xf32>
    %cst_8 = arith.constant dense<0.000000e+00> : vector<8x128xf32>
    %9 = tpu.matmul %7, %8, %cst_8 {dimension_numbers = #tpu.dot_dimension_numbers<[1], [0], [0], [1], [0, 0, 1, 1], [], []>} : vector<8x64xf32>, vector<64x128xf32>, vector<8x128xf32> -> vector<8x128xf32>
    %c0_9 = arith.constant 0 : index
    %c0_10 = arith.constant 0 : index
    %10 = vector.load %arg5[%c0_9, %c0_10] : memref<1x128xf32, #tpu.memory_space<vmem>>, vector<1x128xf32>
    %11 = vector.broadcast %10 : vector<1x128xf32> to vector<8x128xf32>
    %12 = arith.addf %9, %11 : vector<8x128xf32>
    %13 = arith.negf %12 : vector<8x128xf32>
    %14 = math.exp %13 : vector<8x128xf32>
    %cst_11 = arith.constant 1.000000e+00 : f32
    %15 = vector.broadcast %cst_11 : f32 to vector<8x128xf32>
    %16 = arith.addf %15, %14 : vector<8x128xf32>
    %17 = arith.divf %15, %16 : vector<8x128xf32>
    %c0_12 = arith.constant 0 : index
    %c0_13 = arith.constant 0 : index
    %18 = vector.load %arg6[%c0_12, %c0_13] : memref<8x128xf32, #tpu.memory_space<vmem>>, vector<8x128xf32>
    tpu.vector_store %arg6[%c0_12, %c0_13], %17 {strides = array<i32>} : memref<8x128xf32, #tpu.memory_space<vmem>>, vector<8x128xf32>,
    return
  }
  func.func @transform_0(%arg0: i32) -> (i32, i32) {
    %c0_i32 = arith.constant 0 : i32
    %c0_i32_0 = arith.constant 0 : i32
    return %arg0, %c0_i32 : i32, i32
  }
  func.func @transform_1(%arg0: i32) -> (i32, i32) {
    %c0_i32 = arith.constant 0 : i32
    %c0_i32_0 = arith.constant 0 : i32
    %c0_i32_1 = arith.constant 0 : i32
    return %c0_i32, %c0_i32_0 : i32, i32
  }
  func.func @transform_2(%arg0: i32) -> (i32, i32) {
    %c0_i32 = arith.constant 0 : i32
    %c0_i32_0 = arith.constant 0 : i32
    %c0_i32_1 = arith.constant 0 : i32
    return %c0_i32, %c0_i32_0 : i32, i32
  }
  func.func @transform_3(%arg0: i32) -> (i32, i32) {
    %c0_i32 = arith.constant 0 : i32
    %c0_i32_0 = arith.constant 0 : i32
    %c0_i32_1 = arith.constant 0 : i32
    return %c0_i32, %c0_i32_0 : i32, i32
  }
  func.func @transform_4(%arg0: i32) -> (i32, i32) {
    %c0_i32 = arith.constant 0 : i32
    %c0_i32_0 = arith.constant 0 : i32
    %c0_i32_1 = arith.constant 0 : i32
    return %c0_i32, %c0_i32_0 : i32, i32
  }
  func.func @transform_5(%arg0: i32) -> (i32, i32) {
    %c0_i32 = arith.constant 0 : i32
    %c0_i32_0 = arith.constant 0 : i32
    return %arg0, %c0_i32 : i32, i32
  }
}

</mosaic_0001>

<llo_original>
// kernel: tpu_custom_call.1
$region0: #{tpu_custom_call.1}
  #allocation0 [shape = 'u32[]', space=smem, size = 0x4, offset = 0x4, fixed_abs, tag = 'smem constant byte address 0x4 - core index']
  #allocation1 [shape = 'u32[72,128]{1,0:T(1,128)}', space=vmem, size = 0x9000, scoped, tag = 'internal scratch']
  %s0 = inlined_call_operand.hbm [shape: f32[8,32], index: 0, kind: input, shape index: {}]
  %s1 = inlined_call_operand.hbm [shape: f32[32,64], index: 1, kind: input, shape index: {}]
  %s2 = inlined_call_operand.vmem [shape: f32[1,64], index: 2, kind: input, shape index: {}]
  %s3 = inlined_call_operand.hbm [shape: f32[64,128], index: 3, kind: input, shape index: {}]
  %s4 = inlined_call_operand.vmem [shape: f32[1,128], index: 4, kind: input, shape index: {}]
  %s5 = inlined_call_operand.hbm [shape: f32[8,128], index: 5, kind: output, shape index: {}]
  %s6 = sld [smem:[#allocation0]]
  $region42: #{tpu_custom_call.1} parent=0
    _
  %s8 = ssub.s32 1, %s6
  %s9 = scalar_select 0, %s8, %s6
  $region1: #{tpu_custom_call.1} parent=0
    #allocation2 [shape = 'u8[4096]{0}', space=vmem, size = 0x1000, scoped, tag = 'input window, operand 0, single buffered']
    #allocation3 [shape = 's32[1]{0}', space=sflag, size = 0x4, scoped, tag = 'scoped memory for tpu_custom_call.1']
    #allocation4 [shape = 's32[1]{0}', space=sflag, size = 0x4, scoped, tag = 'scoped memory for tpu_custom_call.1']
    #allocation5 [shape = 'u8[16384]{0}', space=vmem, size = 0x4000, scoped, tag = 'input window, operand 1, single buffered']
    #allocation6 [shape = 's32[1]{0}', space=sflag, size = 0x4, scoped, tag = 'scoped memory for tpu_custom_call.1']
    #allocation7 [shape = 'u8[32768]{0}', space=vmem, size = 0x8000, scoped, tag = 'input window, operand 3, single buffered']
    #allocation8 [shape = 'u8[4096]{0}', space=vmem, size = 0x1000, scoped, tag = 'output window, operand 0, single buffered']
    %10 = vsyncpa [#allocation3], 0
    %11 = vsyncpa [#allocation6], 0
    %12 = vsyncpa [#allocation4], 0
    // Predicated region
    $region2: #{tpu_custom_call.1} parent=1 // pred_check
      _
    $region3: #{tpu_custom_call.1} parent=1 // pred_check_branch
      %14 = sbr.rel (0) target = $region5
    $region4: #{tpu_custom_call.1} parent=1 // pred_region
      %16 = vsyncadd [#allocation3], 0
      %s18 = sshll.u32 %s0, 4
      %s19 = int_to_ptr.hbm [resolvable:$true] %s18
      %s20 = sshll.u32 [#allocation2], 4
      %s21 = int_to_ptr.vmem [resolvable:$true] %s20
      %23 = dma.hbm_to_vmem [thread:$0]  %s19, 128, %s21, [#allocation3]
    $region5: #{tpu_custom_call.1} parent=1 // pred_fallthru
      _
    // Predicated region
    $region6: #{tpu_custom_call.1} parent=1 // pred_check
      _
    $region7: #{tpu_custom_call.1} parent=1 // pred_check_branch
      %25 = sbr.rel (0) target = $region9
    $region8: #{tpu_custom_call.1} parent=1 // pred_region
      %27 = vsyncadd [#allocation6], 0
      %s28 = sshll.u32 %s1, 4
      %s29 = int_to_ptr.hbm [resolvable:$true] %s28
      %s30 = sshll.u32 [#allocation5], 4
      %s31 = int_to_ptr.vmem [resolvable:$true] %s30
      %36 = dma.hbm_to_vmem [thread:$0]  %s29, 512, %s31, [#allocation6], 128, 128, 8
    $region9: #{tpu_custom_call.1} parent=1 // pred_fallthru
      _
    // Predicated region
    $region10: #{tpu_custom_call.1} parent=1 // pred_check
      _
    $region11: #{tpu_custom_call.1} parent=1 // pred_check_branch
      %38 = sbr.rel (0) target = $region13
    $region12: #{tpu_custom_call.1} parent=1 // pred_region
      _
    $region13: #{tpu_custom_call.1} parent=1 // pred_fallthru
      _
    // Predicated region
    $region14: #{tpu_custom_call.1} parent=1 // pred_check
      _
    $region15: #{tpu_custom_call.1} parent=1 // pred_check_branch
      %40 = sbr.rel (0) target = $region17
    $region16: #{tpu_custom_call.1} parent=1 // pred_region
      %42 = vsyncadd [#allocation6], 0
      %s43 = sshll.u32 %s3, 4
      %s44 = int_to_ptr.hbm [resolvable:$true] %s43
      %s45 = sshll.u32 [#allocation7], 4
      %s46 = int_to_ptr.vmem [resolvable:$true] %s45
      %51 = dma.hbm_to_vmem [thread:$0]  %s44, 1024, %s46, [#allocation6], 128, 128, 8
    $region17: #{tpu_custom_call.1} parent=1 // pred_fallthru
      _
    // Predicated region
    $region18: #{tpu_custom_call.1} parent=1 // pred_check
      _
    $region19: #{tpu_custom_call.1} parent=1 // pred_check_branch
      %53 = sbr.rel (0) target = $region21
    $region20: #{tpu_custom_call.1} parent=1 // pred_region
      _
    $region21: #{tpu_custom_call.1} parent=1 // pred_fallthru
      _
    // Predicated region
    $region22: #{tpu_custom_call.1} parent=1 // pred_check
      _
    $region23: #{tpu_custom_call.1} parent=1 // pred_check_branch
      %55 = sbr.rel (0) target = $region25
    $region24: #{tpu_custom_call.1} parent=1 // pred_region
      %57 = dma.done [#allocation3], 128
    $region25: #{tpu_custom_call.1} parent=1 // pred_fallthru
      _
    // Predicated region
    $region26: #{tpu_custom_call.1} parent=1 // pred_check
      _
    $region27: #{tpu_custom_call.1} parent=1 // pred_check_branch
      %59 = sbr.rel (0) target = $region29
    $region28: #{tpu_custom_call.1} parent=1 // pred_region
      %61 = dma.done [#allocation6], 512
    $region29: #{tpu_custom_call.1} parent=1 // pred_fallthru
      _
    // Predicated region
    $region30: #{tpu_custom_call.1} parent=1 // pred_check
      _
    $region31: #{tpu_custom_call.1} parent=1 // pred_check_branch
      %63 = sbr.rel (0) target = $region33
    $region32: #{tpu_custom_call.1} parent=1 // pred_region
      %65 = dma.done [#allocation6], 1024
    $region33: #{tpu_custom_call.1} parent=1 // pred_fallthru
      _
    %v66 = vld [vmem:[#allocation2] sm:$0xff]
    %v67 = vld [vmem:[#allocation5] sm:$0xff]
    %v68 = vld [vmem:[#allocation5 + $0x8] sm:$0xff]
    %v69 = vld [vmem:[#allocation5 + $0x10] sm:$0xff]
    %v70 = vld [vmem:[#allocation5 + $0x18] sm:$0xff]
    %v71 = vld [vmem:[%s2] sm:$0x1]
    %v73 = vperm.slane %v71, 0
    %vm75 = vcmask 261120
    %v77 = vsel %vm75, %v66, 0
    %79 = vmatpush.msra.mxu0 0.0
    %80 = vmatpush.msra.mxu0 0.0
    %81 = vmatpush.msra.mxu0 0.0
    %82 = vmatpush.msra.mxu0 0.0
    %83 = vmatpush.msra.mxu0 0.0
    %84 = vmatpush.msra.mxu0 0.0
    %85 = vmatpush.msra.mxu0 0.0
    %86 = vmatpush.msra.mxu0 0.0
    %87 = vmatpush.msra.mxu0 0.0
    %88 = vmatpush.msra.mxu0 0.0
    %89 = vmatpush.msra.mxu0 0.0
    %90 = vmatpush.msra.mxu0 0.0
    %91 = vmatpush.msra.mxu0 %v70
    %92 = vmatpush.msra.mxu0 %v69
    %93 = vmatpush.msra.mxu0 %v68
    %94 = vmatpush.msra.mxu0 %v67
    %95 = vmatmul.f32.gmra.mxu0 %v77
    %v96 = vpop.f32.mrf.mxu0
    %v97 = vadd.f32 %v73, %v96
    %98 = vdwg.mxu0
    %v99 = vmax.f32 %v97, 0.0
    %v100 = vld [vmem:[#allocation7] sm:$0xff]
    %v101 = vld [vmem:[#allocation7 + $0x8] sm:$0xff]
    %v102 = vld [vmem:[#allocation7 + $0x10] sm:$0xff]
    %v103 = vld [vmem:[#allocation7 + $0x18] sm:$0xff]
    %v104 = vld [vmem:[#allocation7 + $0x20] sm:$0xff]
    %v105 = vld [vmem:[#allocation7 + $0x28] sm:$0xff]
    %v106 = vld [vmem:[#allocation7 + $0x30] sm:$0xff]
    %v107 = vld [vmem:[#allocation7 + $0x38] sm:$0xff]
    %v108 = vld [vmem:[%s4] sm:$0x1]
    %v110 = vperm.slane %v108, 0
    %vm112 = vcmask 523264
    %v114 = vsel %vm112, %v99, 0
    %116 = vmatpush.msra.mxu0 0.0
    %117 = vmatpush.msra.mxu0 0.0
    %118 = vmatpush.msra.mxu0 0.0
    %119 = vmatpush.msra.mxu0 0.0
    %120 = vmatpush.msra.mxu0 0.0
    %121 = vmatpush.msra.mxu0 0.0
    %122 = vmatpush.msra.mxu0 0.0
    %123 = vmatpush.msra.mxu0 0.0
    %124 = vmatpush.msra.mxu0 %v107
    %125 = vmatpush.msra.mxu0 %v106
    %126 = vmatpush.msra.mxu0 %v105
    %127 = vmatpush.msra.mxu0 %v104
    %128 = vmatpush.msra.mxu0 %v103
    %129 = vmatpush.msra.mxu0 %v102
    %130 = vmatpush.msra.mxu0 %v101
    %131 = vmatpush.msra.mxu0 %v100
    %132 = vmatmul.f32.gmra.mxu0 %v114
    %v133 = vpop.f32.mrf.mxu0
    %v134 = vadd.f32 %v110, %v133
    %135 = vdwg.mxu0
    %v136 = vxor.u32 %v134, 2147483648
    %v137 = vmul.f32 %v136, 1.442695
    %v138 = vpow.pop %v137
    %v139 = vadd.f32 %v138, 1.0
    %v140 = vrcp.pop %v139
    %v141 = vmul.f32 %v139, %v140
    %v142 = vsub.f32 1.0, %v141
    %v143 = vmul.f32 %v140, %v142
    %v144 = vadd.f32 %v140, %v143
    %vm145 = vweird.f32 %v139
    %vm146 = vweird.f32 %v140
    %vm147 = vmor %vm145, %vm146
    %v148 = vsel %vm147, %v140, %v144
    %v149 = vand.u32 2147483647, %v139
    %vm150 = vcmp.eq.f32.partialorder %v149, 8.507059e+37
    %v151 = vand.u32 %v139, 2147483648
    %v152 = vor.u32 1.1754944e-38, %v151
    %v153 = vsel %vm150, %v152, %v148
    %v154 = vmul.f32 1.0, %v153
    %155 = vst [vmem:[#allocation8] sm:$0xff] %v154
    // Predicated region
    $region34: #{tpu_custom_call.1} parent=1 // pred_check
      _
    $region35: #{tpu_custom_call.1} parent=1 // pred_check_branch
      %157 = sbr.rel (0) target = $region37
    $region36: #{tpu_custom_call.1} parent=1 // pred_region
      %159 = vsyncadd [#allocation4], 0
      %s161 = sshll.u32 [#allocation8], 4
      %s162 = int_to_ptr.vmem [resolvable:$true] %s161
      %s163 = sshll.u32 %s5, 4
      %s164 = int_to_ptr.hbm [resolvable:$true] %s163
      %166 = dma.vmem_to_hbm [thread:$0]  %s162, 128, %s164, [#allocation4]
    $region37: #{tpu_custom_call.1} parent=1 // pred_fallthru
      _
    // Predicated region
    $region38: #{tpu_custom_call.1} parent=1 // pred_check
      _
    $region39: #{tpu_custom_call.1} parent=1 // pred_check_branch
      %168 = sbr.rel (0) target = $region41
    $region40: #{tpu_custom_call.1} parent=1 // pred_region
      %170 = dma.done [#allocation4], 128
    $region41: #{tpu_custom_call.1} parent=1 // pred_fallthru
      _
    %171 = vsyncpa [#allocation3], 1
    %172 = vsyncpa [#allocation6], 1
    %173 = vsyncpa [#allocation4], 1

</llo_original>
